<compile_context>
chip_gen: v7x
topology: tpu7x:2x2x1
jax: 0.10.0
libtpu: 0.0.40
codegen_flags: <defaults>
</compile_context>

<pallas_src>
import functools

import jax
import jax.numpy as jnp
from jax.experimental import pallas as pl
from jax.experimental.pallas import tpu as pltpu

DATASET_NUM_NODE_FEATURES = 2
DATASET_NUM_CLASSES = 2
HIDDEN = 16


# ---------------------------------------------------------------------------
# Kernels (feature-major: activations are (features, nodes))
# ---------------------------------------------------------------------------
def _gin_layer1_kernel(x_ref, m_ref, w1a_ref, b1a_ref, w1b_ref, b1b_ref, h_ref):
    # Aggregation with self-loop already folded into M = (A + I)^T:
    #   (F_in, N) @ (N, tn) -> (F_in, tn)
    m_tile = m_ref[...].astype(jnp.float32)          # bf16 -> f32 (exact, small ints)
    agg = jnp.dot(x_ref[...], m_tile, preferred_element_type=jnp.float32)
    # nn1: Linear(F_in, 2) -> ReLU -> Linear(2, 16), weights are (out, in)
    z = jnp.dot(w1a_ref[...], agg, preferred_element_type=jnp.float32) + b1a_ref[...]
    z = jnp.maximum(z, 0.0)
    h = jnp.dot(w1b_ref[...], z, preferred_element_type=jnp.float32) + b1b_ref[...]
    # F.relu(x) after conv1; F.dropout is identity in eval mode.
    h_ref[...] = jnp.maximum(h, 0.0)


def _gin_layer2_kernel(h_ref, m_ref, w2a_ref, b2a_ref, w2b_ref, b2b_ref, out_ref):
    # Aggregation: (HIDDEN, N) @ (N, tn) -> (HIDDEN, tn)
    m_tile = m_ref[...].astype(jnp.float32)
    agg = jnp.dot(h_ref[...], m_tile, preferred_element_type=jnp.float32)
    # nn2: Linear(16, 2) -> ReLU -> Linear(2, C)
    z = jnp.dot(w2a_ref[...], agg, preferred_element_type=jnp.float32) + b2a_ref[...]
    z = jnp.maximum(z, 0.0)
    logits = jnp.dot(w2b_ref[...], z, preferred_element_type=jnp.float32) + b2b_ref[...]
    # log_softmax over classes (sublane axis); fully present per column tile.
    mx = jnp.max(logits, axis=0, keepdims=True)
    s = logits - mx
    lse = jnp.log(jnp.sum(jnp.exp(s), axis=0, keepdims=True))
    out_ref[...] = s - lse


# ---------------------------------------------------------------------------
# Wrapper
# ---------------------------------------------------------------------------
def _pick_node_tile(n_pad, elem_bytes=2, budget_bytes=12 << 20):
    """Column-tile width so the double-buffered (n_pad, tn) adjacency block
    stays within a VMEM budget safe for every TPU generation's default."""
    tn = (budget_bytes // (2 * n_pad * elem_bytes)) // 128 * 128
    return int(max(128, min(n_pad, tn)))


@functools.partial(jax.jit, static_argnames=())
def jnet_forward(x, A, params):
    """x: (N, F_in) node-major f32.  A: (N, N) node-major, A[i, j] = #edges j->i.
    params: weights as (in, out), biases as (1, out) (as produced by make_params)."""
    n, f_in = x.shape
    n_pad = max(128, ((n + 127) // 128) * 128)
    w1a, b1a, w1b, b1b, w2a, b2a, w2b, b2b = params
    hidden = w1b.shape[1]
    n_cls = w2b.shape[1]

    # ---- host-side layout prep (plain-JAX glue) ----
    # Fold the GIN self term (eps = 0): aggregation+self = (A + I) @ X in
    # node-major, i.e. X_T @ (A + I)^T in feature-major.
    m_mat = (A + jnp.eye(n, dtype=A.dtype)).T
    m_mat = jnp.zeros((n_pad, n_pad), jnp.float32).at[:n, :n].set(m_mat)
    m_bf16 = m_mat.astype(jnp.bfloat16)          # exact: entries are small integers
    x_t = jnp.zeros((f_in, n_pad), jnp.float32).at[:, :n].set(x.T)

    # Weights to (out, in), biases to (out, 1).
    w1a_t, w1b_t, w2a_t, w2b_t = w1a.T, w1b.T, w2a.T, w2b.T
    b1a_c, b1b_c = b1a.reshape(-1, 1), b1b.reshape(-1, 1)
    b2a_c, b2b_c = b2a.reshape(-1, 1), b2b.reshape(-1, 1)

    tn = _pick_node_tile(n_pad)
    grid = (n_pad // tn,)

    # ---- GINConv 1 (fused with its MLP + outer ReLU) ----
    h1 = pl.pallas_call(
        _gin_layer1_kernel,
        out_shape=jax.ShapeDtypeStruct((hidden, n_pad), jnp.float32),
        grid=grid,
        in_specs=[
            pl.BlockSpec((f_in, n_pad), lambda j: (0, 0)),    # X_T, resident
            pl.BlockSpec((n_pad, tn), lambda j: (0, j)),      # adjacency column tile
            pl.BlockSpec(w1a_t.shape, lambda j: (0, 0)),
            pl.BlockSpec(b1a_c.shape, lambda j: (0, 0)),
            pl.BlockSpec(w1b_t.shape, lambda j: (0, 0)),
            pl.BlockSpec(b1b_c.shape, lambda j: (0, 0)),
        ],
        out_specs=pl.BlockSpec((hidden, tn), lambda j: (0, j)),
        compiler_params=pltpu.CompilerParams(
            dimension_semantics=("parallel",)),
    )(x_t, m_bf16, w1a_t, b1a_c, w1b_t, b1b_c)

    # ---- GINConv 2 (fused with its MLP + log_softmax) ----
    out_t = pl.pallas_call(
        _gin_layer2_kernel,
        out_shape=jax.ShapeDtypeStruct((n_cls, n_pad), jnp.float32),
        grid=grid,
        in_specs=[
            pl.BlockSpec((hidden, n_pad), lambda j: (0, 0)),  # H1, resident
            pl.BlockSpec((n_pad, tn), lambda j: (0, j)),      # adjacency column tile
            pl.BlockSpec(w2a_t.shape, lambda j: (0, 0)),
            pl.BlockSpec(b2a_c.shape, lambda j: (0, 0)),
            pl.BlockSpec(w2b_t.shape, lambda j: (0, 0)),
            pl.BlockSpec(b2b_c.shape, lambda j: (0, 0)),
        ],
        out_specs=pl.BlockSpec((n_cls, tn), lambda j: (0, j)),
        compiler_params=pltpu.CompilerParams(
            dimension_semantics=("parallel",)),
    )(h1, m_bf16, w2a_t, b2a_c, w2b_t, b2b_c)

    # Back to node-major (N, C) to match the PyTorch module's output layout.
    return out_t[:, :n].T


# ---------------------------------------------------------------------------
# Reference + test harness
# ---------------------------------------------------------------------------
def jnet_reference(x, A, params):
    """Pure-JAX reference mirroring the PyTorch forward (eval mode)."""
    w1a, b1a, w1b, b1b, w2a, b2a, w2b, b2b = params
    h = x + A @ x
    h = jnp.maximum(h @ w1a + b1a, 0.0)
    h = h @ w1b + b1b
    h = jnp.maximum(h, 0.0)
    h = h + A @ h
    h = jnp.maximum(h @ w2a + b2a, 0.0)
    h = h @ w2b + b2b
    return jax.nn.log_softmax(h, axis=1)


def make_params(key):
    """Deterministic synthetic parameters matching the module's shapes
    (weights stored as (in, out), biases as (1, out))."""
    ks = jax.random.split(key, 4)

    def lin(kw, fan_in, fan_out):
        w = jax.random.normal(kw, (fan_in, fan_out), jnp.float32) * 0.5
        b = jnp.linspace(-0.1, 0.1, fan_out, dtype=jnp.float32).reshape(1, fan_out)
        return w, b

    w1a, b1a = lin(ks[0], DATASET_NUM_NODE_FEATURES, 2)
    w1b, b1b = lin(ks[1], 2, HIDDEN)
    w2a, b2a = lin(ks[2], HIDDEN, 2)
    w2b, b2b = lin(ks[3], 2, DATASET_NUM_CLASSES)
    return (w1a, b1a, w1b, b1b, w2a, b2a, w2b, b2b)


if __name__ == "__main__":
    key = jax.random.PRNGKey(0)
    k_x, k_p = jax.random.split(key)

    num_nodes = 8
    # Undirected chain graph: edges (i, i+1) and (i+1, i), like the example
    # edge_index in the source file but over 8 nodes.
    src = jnp.array(list(range(num_nodes - 1)) +
                    [i + 1 for i in range(num_nodes - 1)], dtype=jnp.int32)
    dst = jnp.array([i + 1 for i in range(num_nodes - 1)] +
                    list(range(num_nodes - 1)), dtype=jnp.int32)
    # Dense adjacency for sum-aggregation (A[i, j] = #edges j -> i).
    A = jnp.zeros((num_nodes, num_nodes), jnp.float32).at[dst, src].add(1.0)

    x = jax.random.normal(k_x, (num_nodes, DATASET_NUM_NODE_FEATURES), jnp.float32)
    params = make_params(k_p)

    out = jax.block_until_ready(jnet_forward(x, A, params))
    ref = jnet_reference(x, A, params)

    assert out.shape == (num_nodes, DATASET_NUM_CLASSES)
    assert jnp.allclose(out, ref, atol=1e-5, rtol=1e-5), "mismatch vs reference"

    print("KERNEL_OK")
</pallas_src>

<mosaic_0001>
module attributes {stable_mosaic.version = 11 : i64} {
  func.func @_gin_layer1_kernel(%arg0: i32, %arg1: memref<2x128xf32, #tpu.memory_space<vmem>>, %arg2: memref<128x128xbf16, #tpu.memory_space<vmem>>, %arg3: memref<2x2xf32, #tpu.memory_space<vmem>>, %arg4: memref<2x1xf32, #tpu.memory_space<vmem>>, %arg5: memref<16x2xf32, #tpu.memory_space<vmem>>, %arg6: memref<16x1xf32, #tpu.memory_space<vmem>>, %arg7: memref<16x128xf32, #tpu.memory_space<vmem>>) attributes {dimension_semantics = [#tpu.dimension_semantics<parallel>], iteration_bounds = array<i64: 1>, scalar_prefetch = 0 : i64, scratch_operands = 0 : i64, tpu.core_type = #tpu.core_type<tc>, window_params = [{pipeline_mode = #tpu.pipeline_mode<synchronous>, transform_indices = @transform_0, window_bounds = array<i64: 2, 128>}, {transform_indices = @transform_1, window_bounds = array<i64: 128, 128>}, {pipeline_mode = #tpu.pipeline_mode<synchronous>, transform_indices = @transform_2, window_bounds = array<i64: 2, 2>}, {pipeline_mode = #tpu.pipeline_mode<synchronous>, transform_indices = @transform_3, window_bounds = array<i64: 2, 1>}, {pipeline_mode = #tpu.pipeline_mode<synchronous>, transform_indices = @transform_4, window_bounds = array<i64: 16, 2>}, {pipeline_mode = #tpu.pipeline_mode<synchronous>, transform_indices = @transform_5, window_bounds = array<i64: 16, 1>}, {transform_indices = @transform_6, window_bounds = array<i64: 16, 128>}]} {
    %c0 = arith.constant 0 : index
    %c0_0 = arith.constant 0 : index
    %0 = vector.load %arg2[%c0, %c0_0] : memref<128x128xbf16, #tpu.memory_space<vmem>>, vector<128x128xbf16>
    %1 = arith.extf %0 : vector<128x128xbf16> to vector<128x128xf32>
    %c0_1 = arith.constant 0 : index
    %c0_2 = arith.constant 0 : index
    %2 = vector.load %arg1[%c0_1, %c0_2] : memref<2x128xf32, #tpu.memory_space<vmem>>, vector<2x128xf32>
    %cst = arith.constant dense<0.000000e+00> : vector<2x128xf32>
    %3 = tpu.matmul %2, %1, %cst {dimension_numbers = #tpu.dot_dimension_numbers<[1], [0], [0], [1], [0, 0, 1, 1], [], []>} : vector<2x128xf32>, vector<128x128xf32>, vector<2x128xf32> -> vector<2x128xf32>
    %c0_3 = arith.constant 0 : index
    %c0_4 = arith.constant 0 : index
    %4 = vector.load %arg3[%c0_3, %c0_4] : memref<2x2xf32, #tpu.memory_space<vmem>>, vector<2x2xf32>
    %cst_5 = arith.constant dense<0.000000e+00> : vector<2x128xf32>
    %5 = tpu.matmul %4, %3, %cst_5 {dimension_numbers = #tpu.dot_dimension_numbers<[1], [0], [0], [1], [0, 0, 1, 1], [], []>} : vector<2x2xf32>, vector<2x128xf32>, vector<2x128xf32> -> vector<2x128xf32>
    %c0_6 = arith.constant 0 : index
    %c0_7 = arith.constant 0 : index
    %6 = vector.load %arg4[%c0_6, %c0_7] : memref<2x1xf32, #tpu.memory_space<vmem>>, vector<2x1xf32>
    %7 = vector.broadcast %6 : vector<2x1xf32> to vector<2x128xf32>
    %8 = arith.addf %5, %7 : vector<2x128xf32>
    %cst_8 = arith.constant 0.000000e+00 : f32
    %9 = vector.broadcast %cst_8 : f32 to vector<2x128xf32>
    %10 = arith.maximumf %8, %9 : vector<2x128xf32>
    %c0_9 = arith.constant 0 : index
    %c0_10 = arith.constant 0 : index
    %11 = vector.load %arg5[%c0_9, %c0_10] : memref<16x2xf32, #tpu.memory_space<vmem>>, vector<16x2xf32>
    %cst_11 = arith.constant dense<0.000000e+00> : vector<16x128xf32>
    %12 = tpu.matmul %11, %10, %cst_11 {dimension_numbers = #tpu.dot_dimension_numbers<[1], [0], [0], [1], [0, 0, 1, 1], [], []>} : vector<16x2xf32>, vector<2x128xf32>, vector<16x128xf32> -> vector<16x128xf32>
    %c0_12 = arith.constant 0 : index
    %c0_13 = arith.constant 0 : index
    %13 = vector.load %arg6[%c0_12, %c0_13] : memref<16x1xf32, #tpu.memory_space<vmem>>, vector<16x1xf32>
    %14 = vector.broadcast %13 : vector<16x1xf32> to vector<16x128xf32>
    %15 = arith.addf %12, %14 : vector<16x128xf32>
    %cst_14 = arith.constant 0.000000e+00 : f32
    %16 = vector.broadcast %cst_14 : f32 to vector<16x128xf32>
    %17 = arith.maximumf %15, %16 : vector<16x128xf32>
    %c0_15 = arith.constant 0 : index
    %c0_16 = arith.constant 0 : index
    %18 = vector.load %arg7[%c0_15, %c0_16] : memref<16x128xf32, #tpu.memory_space<vmem>>, vector<16x128xf32>
    tpu.vector_store %arg7[%c0_15, %c0_16], %17 {strides = array<i32>} : memref<16x128xf32, #tpu.memory_space<vmem>>, vector<16x128xf32>,
    return
  }
  func.func @transform_0(%arg0: i32) -> (i32, i32) {
    %c0_i32 = arith.constant 0 : i32
    %c0_i32_0 = arith.constant 0 : i32
    %c0_i32_1 = arith.constant 0 : i32
    return %c0_i32, %c0_i32_0 : i32, i32
  }
  func.func @transform_1(%arg0: i32) -> (i32, i32) {
    %c0_i32 = arith.constant 0 : i32
    %c0_i32_0 = arith.constant 0 : i32
    return %c0_i32, %arg0 : i32, i32
  }
  func.func @transform_2(%arg0: i32) -> (i32, i32) {
    %c0_i32 = arith.constant 0 : i32
    %c0_i32_0 = arith.constant 0 : i32
    %c0_i32_1 = arith.constant 0 : i32
    return %c0_i32, %c0_i32_0 : i32, i32
  }
  func.func @transform_3(%arg0: i32) -> (i32, i32) {
    %c0_i32 = arith.constant 0 : i32
    %c0_i32_0 = arith.constant 0 : i32
    %c0_i32_1 = arith.constant 0 : i32
    return %c0_i32, %c0_i32_0 : i32, i32
  }
  func.func @transform_4(%arg0: i32) -> (i32, i32) {
    %c0_i32 = arith.constant 0 : i32
    %c0_i32_0 = arith.constant 0 : i32
    %c0_i32_1 = arith.constant 0 : i32
    return %c0_i32, %c0_i32_0 : i32, i32
  }
  func.func @transform_5(%arg0: i32) -> (i32, i32) {
    %c0_i32 = arith.constant 0 : i32
    %c0_i32_0 = arith.constant 0 : i32
    %c0_i32_1 = arith.constant 0 : i32
    return %c0_i32, %c0_i32_0 : i32, i32
  }
  func.func @transform_6(%arg0: i32) -> (i32, i32) {
    %c0_i32 = arith.constant 0 : i32
    %c0_i32_0 = arith.constant 0 : i32
    return %c0_i32, %arg0 : i32, i32
  }
}

module attributes {stable_mosaic.version = 11 : i64} {
  func.func @_gin_layer2_kernel(%arg0: i32, %arg1: memref<16x128xf32, #tpu.memory_space<vmem>>, %arg2: memref<128x128xbf16, #tpu.memory_space<vmem>>, %arg3: memref<2x16xf32, #tpu.memory_space<vmem>>, %arg4: memref<2x1xf32, #tpu.memory_space<vmem>>, %arg5: memref<2x2xf32, #tpu.memory_space<vmem>>, %arg6: memref<2x1xf32, #tpu.memory_space<vmem>>, %arg7: memref<2x128xf32, #tpu.memory_space<vmem>>) attributes {dimension_semantics = [#tpu.dimension_semantics<parallel>], iteration_bounds = array<i64: 1>, scalar_prefetch = 0 : i64, scratch_operands = 0 : i64, tpu.core_type = #tpu.core_type<tc>, window_params = [{pipeline_mode = #tpu.pipeline_mode<synchronous>, transform_indices = @transform_0, window_bounds = array<i64: 16, 128>}, {transform_indices = @transform_1, window_bounds = array<i64: 128, 128>}, {pipeline_mode = #tpu.pipeline_mode<synchronous>, transform_indices = @transform_2, window_bounds = array<i64: 2, 16>}, {pipeline_mode = #tpu.pipeline_mode<synchronous>, transform_indices = @transform_3, window_bounds = array<i64: 2, 1>}, {pipeline_mode = #tpu.pipeline_mode<synchronous>, transform_indices = @transform_4, window_bounds = array<i64: 2, 2>}, {pipeline_mode = #tpu.pipeline_mode<synchronous>, transform_indices = @transform_5, window_bounds = array<i64: 2, 1>}, {transform_indices = @transform_6, window_bounds = array<i64: 2, 128>}]} {
    %c0 = arith.constant 0 : index
    %c0_0 = arith.constant 0 : index
    %0 = vector.load %arg2[%c0, %c0_0] : memref<128x128xbf16, #tpu.memory_space<vmem>>, vector<128x128xbf16>
    %1 = arith.extf %0 : vector<128x128xbf16> to vector<128x128xf32>
    %c0_1 = arith.constant 0 : index
    %c0_2 = arith.constant 0 : index
    %2 = vector.load %arg1[%c0_1, %c0_2] : memref<16x128xf32, #tpu.memory_space<vmem>>, vector<16x128xf32>
    %cst = arith.constant dense<0.000000e+00> : vector<16x128xf32>
    %3 = tpu.matmul %2, %1, %cst {dimension_numbers = #tpu.dot_dimension_numbers<[1], [0], [0], [1], [0, 0, 1, 1], [], []>} : vector<16x128xf32>, vector<128x128xf32>, vector<16x128xf32> -> vector<16x128xf32>
    %c0_3 = arith.constant 0 : index
    %c0_4 = arith.constant 0 : index
    %4 = vector.load %arg3[%c0_3, %c0_4] : memref<2x16xf32, #tpu.memory_space<vmem>>, vector<2x16xf32>
    %cst_5 = arith.constant dense<0.000000e+00> : vector<2x128xf32>
    %5 = tpu.matmul %4, %3, %cst_5 {dimension_numbers = #tpu.dot_dimension_numbers<[1], [0], [0], [1], [0, 0, 1, 1], [], []>} : vector<2x16xf32>, vector<16x128xf32>, vector<2x128xf32> -> vector<2x128xf32>
    %c0_6 = arith.constant 0 : index
    %c0_7 = arith.constant 0 : index
    %6 = vector.load %arg4[%c0_6, %c0_7] : memref<2x1xf32, #tpu.memory_space<vmem>>, vector<2x1xf32>
    %7 = vector.broadcast %6 : vector<2x1xf32> to vector<2x128xf32>
    %8 = arith.addf %5, %7 : vector<2x128xf32>
    %cst_8 = arith.constant 0.000000e+00 : f32
    %9 = vector.broadcast %cst_8 : f32 to vector<2x128xf32>
    %10 = arith.maximumf %8, %9 : vector<2x128xf32>
    %c0_9 = arith.constant 0 : index
    %c0_10 = arith.constant 0 : index
    %11 = vector.load %arg5[%c0_9, %c0_10] : memref<2x2xf32, #tpu.memory_space<vmem>>, vector<2x2xf32>
    %cst_11 = arith.constant dense<0.000000e+00> : vector<2x128xf32>
    %12 = tpu.matmul %11, %10, %cst_11 {dimension_numbers = #tpu.dot_dimension_numbers<[1], [0], [0], [1], [0, 0, 1, 1], [], []>} : vector<2x2xf32>, vector<2x128xf32>, vector<2x128xf32> -> vector<2x128xf32>
    %c0_12 = arith.constant 0 : index
    %c0_13 = arith.constant 0 : index
    %13 = vector.load %arg6[%c0_12, %c0_13] : memref<2x1xf32, #tpu.memory_space<vmem>>, vector<2x1xf32>
    %14 = vector.broadcast %13 : vector<2x1xf32> to vector<2x128xf32>
    %15 = arith.addf %12, %14 : vector<2x128xf32>
    %cst_14 = arith.constant dense<0xFF800000> : vector<128xf32>
    %16 = vector.multi_reduction <maximumf>, %15, %cst_14 [0] : vector<2x128xf32> to vector<128xf32>
    %17 = vector.shape_cast %16 : vector<128xf32> to vector<1x128xf32>
    %18 = vector.broadcast %17 : vector<1x128xf32> to vector<2x128xf32>
    %19 = arith.subf %15, %18 : vector<2x128xf32>
    %20 = math.exp %19 : vector<2x128xf32>
    %cst_15 = arith.constant dense<0.000000e+00> : vector<128xf32>
    %21 = vector.multi_reduction <add>, %20, %cst_15 [0] : vector<2x128xf32> to vector<128xf32>
    %22 = vector.shape_cast %21 : vector<128xf32> to vector<1x128xf32>
    %23 = math.log %22 : vector<1x128xf32>
    %24 = vector.broadcast %23 : vector<1x128xf32> to vector<2x128xf32>
    %25 = arith.subf %19, %24 : vector<2x128xf32>
    %c0_16 = arith.constant 0 : index
    %c0_17 = arith.constant 0 : index
    %26 = vector.load %arg7[%c0_16, %c0_17] : memref<2x128xf32, #tpu.memory_space<vmem>>, vector<2x128xf32>
    tpu.vector_store %arg7[%c0_16, %c0_17], %25 {strides = array<i32>} : memref<2x128xf32, #tpu.memory_space<vmem>>, vector<2x128xf32>,
    return
  }
  func.func @transform_0(%arg0: i32) -> (i32, i32) {
    %c0_i32 = arith.constant 0 : i32
    %c0_i32_0 = arith.constant 0 : i32
    %c0_i32_1 = arith.constant 0 : i32
    return %c0_i32, %c0_i32_0 : i32, i32
  }
  func.func @transform_1(%arg0: i32) -> (i32, i32) {
    %c0_i32 = arith.constant 0 : i32
    %c0_i32_0 = arith.constant 0 : i32
    return %c0_i32, %arg0 : i32, i32
  }
  func.func @transform_2(%arg0: i32) -> (i32, i32) {
    %c0_i32 = arith.constant 0 : i32
    %c0_i32_0 = arith.constant 0 : i32
    %c0_i32_1 = arith.constant 0 : i32
    return %c0_i32, %c0_i32_0 : i32, i32
  }
  func.func @transform_3(%arg0: i32) -> (i32, i32) {
    %c0_i32 = arith.constant 0 : i32
    %c0_i32_0 = arith.constant 0 : i32
    %c0_i32_1 = arith.constant 0 : i32
    return %c0_i32, %c0_i32_0 : i32, i32
  }
  func.func @transform_4(%arg0: i32) -> (i32, i32) {
    %c0_i32 = arith.constant 0 : i32
    %c0_i32_0 = arith.constant 0 : i32
    %c0_i32_1 = arith.constant 0 : i32
    return %c0_i32, %c0_i32_0 : i32, i32
  }
  func.func @transform_5(%arg0: i32) -> (i32, i32) {
    %c0_i32 = arith.constant 0 : i32
    %c0_i32_0 = arith.constant 0 : i32
    %c0_i32_1 = arith.constant 0 : i32
    return %c0_i32, %c0_i32_0 : i32, i32
  }
  func.func @transform_6(%arg0: i32) -> (i32, i32) {
    %c0_i32 = arith.constant 0 : i32
    %c0_i32_0 = arith.constant 0 : i32
    return %c0_i32, %arg0 : i32, i32
  }
}

</mosaic_0001>

<llo_original>
// kernel: jnet_forward.3
$region0: #{jnet_forward.3}
  #allocation0 [shape = 'u32[]', space=smem, size = 0x4, offset = 0x4, fixed_abs, tag = 'smem constant byte address 0x4 - core index']
  #allocation1 [shape = 'u32[144,128]{1,0:T(1,128)}', space=vmem, size = 0x12000, scoped, tag = 'internal scratch']
  %s0 = inlined_call_operand.vmem [shape: f32[16,128], index: 0, kind: input, shape index: {}]
  %s1 = inlined_call_operand.vmem [shape: bf16[128,128], index: 1, kind: input, shape index: {}]
  %s2 = inlined_call_operand.vmem [shape: f32[2,16], index: 2, kind: input, shape index: {}]
  %s3 = inlined_call_operand.vmem [shape: f32[2,1], index: 3, kind: input, shape index: {}]
  %s4 = inlined_call_operand.vmem [shape: f32[2,2], index: 4, kind: input, shape index: {}]
  %s5 = inlined_call_operand.vmem [shape: f32[2,1], index: 5, kind: input, shape index: {}]
  %s6 = inlined_call_operand.vmem [shape: f32[2,128], index: 6, kind: output, shape index: {}]
  %s7 = sld [smem:[#allocation0]]
  $region34: #{jnet_forward.3} parent=0
    _
  %s9 = ssub.s32 1, %s7
  %s10 = scalar_select 0, %s9, %s7
  // Predicated region
  $region2: #{jnet_forward.3} parent=0 // pred_check
    _
  $region3: #{jnet_forward.3} parent=0 // pred_check_branch
    %12 = sbr.rel (0) target = $region5
  $region4: #{jnet_forward.3} parent=0 // pred_region
    _
  $region5: #{jnet_forward.3} parent=0 // pred_fallthru
    _
  // Predicated region
  $region6: #{jnet_forward.3} parent=0 // pred_check
    _
  $region7: #{jnet_forward.3} parent=0 // pred_check_branch
    %14 = sbr.rel (0) target = $region9
  $region8: #{jnet_forward.3} parent=0 // pred_region
    _
  $region9: #{jnet_forward.3} parent=0 // pred_fallthru
    _
  // Predicated region
  $region10: #{jnet_forward.3} parent=0 // pred_check
    _
  $region11: #{jnet_forward.3} parent=0 // pred_check_branch
    %16 = sbr.rel (0) target = $region13
  $region12: #{jnet_forward.3} parent=0 // pred_region
    _
  $region13: #{jnet_forward.3} parent=0 // pred_fallthru
    _
  // Predicated region
  $region14: #{jnet_forward.3} parent=0 // pred_check
    _
  $region15: #{jnet_forward.3} parent=0 // pred_check_branch
    %18 = sbr.rel (0) target = $region17
  $region16: #{jnet_forward.3} parent=0 // pred_region
    _
  $region17: #{jnet_forward.3} parent=0 // pred_fallthru
    _
  // Predicated region
  $region18: #{jnet_forward.3} parent=0 // pred_check
    _
  $region19: #{jnet_forward.3} parent=0 // pred_check_branch
    %20 = sbr.rel (0) target = $region21
  $region20: #{jnet_forward.3} parent=0 // pred_region
    _
  $region21: #{jnet_forward.3} parent=0 // pred_fallthru
    _
  // Predicated region
  $region22: #{jnet_forward.3} parent=0 // pred_check
    _
  $region23: #{jnet_forward.3} parent=0 // pred_check_branch
    %22 = sbr.rel (0) target = $region25
  $region24: #{jnet_forward.3} parent=0 // pred_region
    _
  $region25: #{jnet_forward.3} parent=0 // pred_fallthru
    _
  %v23 = vld [vmem:[%s1] sm:$0xf]
  %v24 = vld [vmem:[%s1 + $0x4] sm:$0xf]
  %v25 = vld [vmem:[%s1 + $0x8] sm:$0xf]
  %v26 = vld [vmem:[%s1 + $0xc] sm:$0xf]
  %v27 = vld [vmem:[%s1 + $0x10] sm:$0xf]
  %v28 = vld [vmem:[%s1 + $0x14] sm:$0xf]
  %v29 = vld [vmem:[%s1 + $0x18] sm:$0xf]
  %v30 = vld [vmem:[%s1 + $0x1c] sm:$0xf]
  %v31 = vld [vmem:[%s1 + $0x20] sm:$0xf]
  %v32 = vld [vmem:[%s1 + $0x24] sm:$0xf]
  %v33 = vld [vmem:[%s1 + $0x28] sm:$0xf]
  %v34 = vld [vmem:[%s1 + $0x2c] sm:$0xf]
  %v35 = vld [vmem:[%s1 + $0x30] sm:$0xf]
  %v36 = vld [vmem:[%s1 + $0x34] sm:$0xf]
  %v37 = vld [vmem:[%s1 + $0x38] sm:$0xf]
  %v38 = vld [vmem:[%s1 + $0x3c] sm:$0xf]
  %v39 = vunpack.c.l.bf16 %v23
  %v40 = vunpack.c.l.bf16 %v24
  %v41 = vunpack.c.l.bf16 %v25
  %v42 = vunpack.c.l.bf16 %v26
  %v43 = vunpack.c.l.bf16 %v27
  %v44 = vunpack.c.l.bf16 %v28
  %v45 = vunpack.c.l.bf16 %v29
  %v46 = vunpack.c.l.bf16 %v30
  %v47 = vunpack.c.l.bf16 %v31
  %v48 = vunpack.c.l.bf16 %v32
  %v49 = vunpack.c.l.bf16 %v33
  %v50 = vunpack.c.l.bf16 %v34
  %v51 = vunpack.c.l.bf16 %v35
  %v52 = vunpack.c.l.bf16 %v36
  %v53 = vunpack.c.l.bf16 %v37
  %v54 = vunpack.c.l.bf16 %v38
  %v55 = vld [vmem:[%s0] sm:$0xff]
  %v56 = vld [vmem:[%s0 + $0x8] sm:$0xff]
  %57 = vmatprep.subr.mxu0 0.0
  %58 = vmatpush1.msra.mxu0 %v39
  %59 = vmatprep.subr.mxu0 0.0
  %60 = vmatpush1.msra.mxu0 %v40
  %61 = vmatprep.subr.mxu0 0.0
  %62 = vmatpush1.msra.mxu0 %v41
  %63 = vmatprep.subr.mxu0 0.0
  %64 = vmatpush1.msra.mxu0 %v42
  %65 = vmatprep.subr.mxu0 0.0
  %66 = vmatpush1.msra.mxu0 %v43
  %67 = vmatprep.subr.mxu0 0.0
  %68 = vmatpush1.msra.mxu0 %v44
  %69 = vmatprep.subr.mxu0 0.0
  %70 = vmatpush1.msra.mxu0 %v45
  %71 = vmatprep.subr.mxu0 0.0
  %72 = vmatpush1.msra.mxu0 %v46
  %73 = vmatprep.subr.mxu0 0.0
  %74 = vmatpush1.msra.mxu0 %v47
  %75 = vmatprep.subr.mxu0 0.0
  %76 = vmatpush1.msra.mxu0 %v48
  %77 = vmatprep.subr.mxu0 0.0
  %78 = vmatpush1.msra.mxu0 %v49
  %79 = vmatprep.subr.mxu0 0.0
  %80 = vmatpush1.msra.mxu0 %v50
  %81 = vmatprep.subr.mxu0 0.0
  %82 = vmatpush1.msra.mxu0 %v51
  %83 = vmatprep.subr.mxu0 0.0
  %84 = vmatpush1.msra.mxu0 %v52
  %85 = vmatprep.subr.mxu0 0.0
  %86 = vmatpush1.msra.mxu0 %v53
  %87 = vmatprep.subr.mxu0 0.0
  %88 = vmatpush1.msra.mxu0 %v54
  %89 = vmatprep.subr.mxu0 0.0
  %90 = vmatpush1.msra.mxu0 0.0
  %91 = vmatprep.subr.mxu0 0.0
  %92 = vmatpush1.msra.mxu0 0.0
  %93 = vmatprep.subr.mxu0 0.0
  %94 = vmatpush1.msra.mxu0 0.0
  %95 = vmatprep.subr.mxu0 0.0
  %96 = vmatpush1.msra.mxu0 0.0
  %97 = vmatprep.subr.mxu0 0.0
  %98 = vmatpush1.msra.mxu0 0.0
  %99 = vmatprep.subr.mxu0 0.0
  %100 = vmatpush1.msra.mxu0 0.0
  %101 = vmatprep.subr.mxu0 0.0
  %102 = vmatpush1.msra.mxu0 0.0
  %103 = vmatprep.subr.mxu0 0.0
  %104 = vmatpush1.msra.mxu0 0.0
  %105 = vmatprep.subr.mxu0 0.0
  %106 = vmatpush1.msra.mxu0 0.0
  %107 = vmatprep.subr.mxu0 0.0
  %108 = vmatpush1.msra.mxu0 0.0
  %109 = vmatprep.subr.mxu0 0.0
  %110 = vmatpush1.msra.mxu0 0.0
  %111 = vmatprep.subr.mxu0 0.0
  %112 = vmatpush1.msra.mxu0 0.0
  %113 = vmatprep.subr.mxu0 0.0
  %114 = vmatpush1.msra.mxu0 0.0
  %115 = vmatprep.subr.mxu0 0.0
  %116 = vmatpush1.msra.mxu0 0.0
  %117 = vmatprep.subr.mxu0 0.0
  %118 = vmatpush1.msra.mxu0 0.0
  %119 = vmatprep.subr.mxu0 0.0
  %120 = vmatpush1.msra.mxu0 0.0
  %121 = vmatprep.mubr.f32.mxu0 0.0
  %122 = vmatmul.mubr.f32.gmra.mrb[0].mxu0 %v55
  %v123 = vpop.f32.mrb[0].mxu0
  %v124 = vadd.f32 0.0, %v123
  %v125 = vpop.f32.mrb[0].mxu0
  %126 = vmatprep.mubr.f32.mxu0 0.0
  %127 = vmatmul.mubr.f32.gmra.mrb[0].mxu0 %v56
  %v128 = vpop.f32.mrb[0].mxu0
  %v129 = vadd.f32 0.0, %v128
  %v130 = vpop.f32.mrb[0].mxu0
  %131 = vdwg.mxu0
  %v132 = vld [vmem:[%s2] sm:$0x3]
  %v133 = vld [vmem:[%s3] sm:$0x3]
  %135 = vset.pattern.permute.xlu0 0
  %136 = vperm.xlu0 %135, %v133
  %v137 = vpop.permute.xlu0 %136
  %vm139 = vcmask 130048
  %v141 = vsel %vm139, %v132, 0
  %143 = vmatprep.subr.mxu0 0.0
  %144 = vmatpush1.msra.mxu0 %v124
  %145 = vmatprep.subr.mxu0 0.0
  %146 = vmatpush1.msra.mxu0 %v129
  %147 = vmatprep.subr.mxu0 0.0
  %148 = vmatpush1.msra.mxu0 0.0
  %149 = vmatprep.subr.mxu0 0.0
  %150 = vmatpush1.msra.mxu0 0.0
  %151 = vmatprep.subr.mxu0 0.0
  %152 = vmatpush1.msra.mxu0 0.0
  %153 = vmatprep.subr.mxu0 0.0
  %154 = vmatpush1.msra.mxu0 0.0
  %155 = vmatprep.subr.mxu0 0.0
  %156 = vmatpush1.msra.mxu0 0.0
  %157 = vmatprep.subr.mxu0 0.0
  %158 = vmatpush1.msra.mxu0 0.0
  %159 = vmatprep.subr.mxu0 0.0
  %160 = vmatpush1.msra.mxu0 0.0
  %161 = vmatprep.subr.mxu0 0.0
  %162 = vmatpush1.msra.mxu0 0.0
  %163 = vmatprep.subr.mxu0 0.0
  %164 = vmatpush1.msra.mxu0 0.0
  %165 = vmatprep.subr.mxu0 0.0
  %166 = vmatpush1.msra.mxu0 0.0
  %167 = vmatprep.subr.mxu0 0.0
  %168 = vmatpush1.msra.mxu0 0.0
  %169 = vmatprep.subr.mxu0 0.0
  %170 = vmatpush1.msra.mxu0 0.0
  %171 = vmatprep.subr.mxu0 0.0
  %172 = vmatpush1.msra.mxu0 0.0
  %173 = vmatprep.subr.mxu0 0.0
  %174 = vmatpush1.msra.mxu0 0.0
  %175 = vmatprep.subr.mxu0 0.0
  %176 = vmatpush1.msra.mxu0 0.0
  %177 = vmatprep.subr.mxu0 0.0
  %178 = vmatpush1.msra.mxu0 0.0
  %179 = vmatprep.subr.mxu0 0.0
  %180 = vmatpush1.msra.mxu0 0.0
  %181 = vmatprep.subr.mxu0 0.0
  %182 = vmatpush1.msra.mxu0 0.0
  %183 = vmatprep.subr.mxu0 0.0
  %184 = vmatpush1.msra.mxu0 0.0
  %185 = vmatprep.subr.mxu0 0.0
  %186 = vmatpush1.msra.mxu0 0.0
  %187 = vmatprep.subr.mxu0 0.0
  %188 = vmatpush1.msra.mxu0 0.0
  %189 = vmatprep.subr.mxu0 0.0
  %190 = vmatpush1.msra.mxu0 0.0
  %191 = vmatprep.subr.mxu0 0.0
  %192 = vmatpush1.msra.mxu0 0.0
  %193 = vmatprep.subr.mxu0 0.0
  %194 = vmatpush1.msra.mxu0 0.0
  %195 = vmatprep.subr.mxu0 0.0
  %196 = vmatpush1.msra.mxu0 0.0
  %197 = vmatprep.subr.mxu0 0.0
  %198 = vmatpush1.msra.mxu0 0.0
  %199 = vmatprep.subr.mxu0 0.0
  %200 = vmatpush1.msra.mxu0 0.0
  %201 = vmatprep.subr.mxu0 0.0
  %202 = vmatpush1.msra.mxu0 0.0
  %203 = vmatprep.subr.mxu0 0.0
  %204 = vmatpush1.msra.mxu0 0.0
  %205 = vmatprep.subr.mxu0 0.0
  %206 = vmatpush1.msra.mxu0 0.0
  %207 = vmatprep.mubr.f32.mxu0 0.0
  %208 = vmatmul.mubr.f32.gmra.mrb[0].mxu0 %v141
  %v209 = vpop.f32.mrb[0].mxu0
  %v210 = vadd.f32 %v137, %v209
  %v211 = vpop.f32.mrb[0].mxu0
  %212 = vdwg.mxu0
  %v213 = vmax.f32 %v210, 0.0
  %v214 = vld [vmem:[%s4] sm:$0x3]
  %v215 = vld [vmem:[%s5] sm:$0x3]
  %217 = vset.pattern.permute.xlu0 0
  %218 = vperm.xlu0 %217, %v215
  %v219 = vpop.permute.xlu0 %218
  %vm221 = vcmask 15360
  %v223 = vsel %vm221, %v214, 0
  %vm225 = vcmask 1041408
  %v227 = vsel %vm225, %v213, 0
  %229 = vmatprep.subr.mxu0 0.0
  %230 = vmatpush1.msra.mxu0 %v227
  %231 = vmatprep.subr.mxu0 0.0
  %232 = vmatpush1.msra.mxu0 0.0
  %233 = vmatprep.subr.mxu0 0.0
  %234 = vmatpush1.msra.mxu0 0.0
  %235 = vmatprep.subr.mxu0 0.0
  %236 = vmatpush1.msra.mxu0 0.0
  %237 = vmatprep.subr.mxu0 0.0
  %238 = vmatpush1.msra.mxu0 0.0
  %239 = vmatprep.subr.mxu0 0.0
  %240 = vmatpush1.msra.mxu0 0.0
  %241 = vmatprep.subr.mxu0 0.0
  %242 = vmatpush1.msra.mxu0 0.0
  %243 = vmatprep.subr.mxu0 0.0
  %244 = vmatpush1.msra.mxu0 0.0
  %245 = vmatprep.subr.mxu0 0.0
  %246 = vmatpush1.msra.mxu0 0.0
  %247 = vmatprep.subr.mxu0 0.0
  %248 = vmatpush1.msra.mxu0 0.0
  %249 = vmatprep.subr.mxu0 0.0
  %250 = vmatpush1.msra.mxu0 0.0
  %251 = vmatprep.subr.mxu0 0.0
  %252 = vmatpush1.msra.mxu0 0.0
  %253 = vmatprep.subr.mxu0 0.0
  %254 = vmatpush1.msra.mxu0 0.0
  %255 = vmatprep.subr.mxu0 0.0
  %256 = vmatpush1.msra.mxu0 0.0
  %257 = vmatprep.subr.mxu0 0.0
  %258 = vmatpush1.msra.mxu0 0.0
  %259 = vmatprep.subr.mxu0 0.0
  %260 = vmatpush1.msra.mxu0 0.0
  %261 = vmatprep.subr.mxu0 0.0
  %262 = vmatpush1.msra.mxu0 0.0
  %263 = vmatprep.subr.mxu0 0.0
  %264 = vmatpush1.msra.mxu0 0.0
  %265 = vmatprep.subr.mxu0 0.0
  %266 = vmatpush1.msra.mxu0 0.0
  %267 = vmatprep.subr.mxu0 0.0
  %268 = vmatpush1.msra.mxu0 0.0
  %269 = vmatprep.subr.mxu0 0.0
  %270 = vmatpush1.msra.mxu0 0.0
  %271 = vmatprep.subr.mxu0 0.0
  %272 = vmatpush1.msra.mxu0 0.0
  %273 = vmatprep.subr.mxu0 0.0
  %274 = vmatpush1.msra.mxu0 0.0
  %275 = vmatprep.subr.mxu0 0.0
  %276 = vmatpush1.msra.mxu0 0.0
  %277 = vmatprep.subr.mxu0 0.0
  %278 = vmatpush1.msra.mxu0 0.0
  %279 = vmatprep.subr.mxu0 0.0
  %280 = vmatpush1.msra.mxu0 0.0
  %281 = vmatprep.subr.mxu0 0.0
  %282 = vmatpush1.msra.mxu0 0.0
  %283 = vmatprep.subr.mxu0 0.0
  %284 = vmatpush1.msra.mxu0 0.0
  %285 = vmatprep.subr.mxu0 0.0
  %286 = vmatpush1.msra.mxu0 0.0
  %287 = vmatprep.subr.mxu0 0.0
  %288 = vmatpush1.msra.mxu0 0.0
  %289 = vmatprep.subr.mxu0 0.0
  %290 = vmatpush1.msra.mxu0 0.0
  %291 = vmatprep.subr.mxu0 0.0
  %292 = vmatpush1.msra.mxu0 0.0
  %293 = vmatprep.mubr.f32.mxu0 0.0
  %294 = vmatmul.mubr.f32.gmra.mrb[0].mxu0 %v223
  %v295 = vpop.f32.mrb[0].mxu0
  %v296 = vadd.f32 %v219, %v295
  %v297 = vpop.f32.mrb[0].mxu0
  %298 = vdwg.mxu0
  %v299 = vsel %vm225, %v296, -inf
  %v300 = vrot.slane %v299, 4
  %v301 = vmax.f32 %v299, %v300
  %v302 = vrot.slane %v301, 2
  %v303 = vmax.f32 %v301, %v302
  %v304 = vrot.slane %v303, 1
  %v305 = vmax.f32 %v303, %v304
  %v306 = vsub.f32 %v296, %v305
  %v307 = vmul.f32 %v306, 1.442695
  %v308 = vpow.pop %v307
  %v309 = vsel %vm225, %v308, 0.0
  %v310 = vrot.slane %v309, 4
  %v311 = vadd.f32 %v309, %v310
  %v312 = vrot.slane %v311, 2
  %v313 = vadd.f32 %v311, %v312
  %v314 = vrot.slane %v313, 1
  %v315 = vadd.f32 %v313, %v314
  %v316 = vlog2.pop %v315
  %v317 = vmul.f32 %v316, 0.6931472
  %v318 = vsub.f32 %v306, %v317
  %319 = vst [vmem:[%s6] sm:$0x3] %v318
  // Predicated region
  $region26: #{jnet_forward.3} parent=0 // pred_check
    _
  $region27: #{jnet_forward.3} parent=0 // pred_check_branch
    %321 = sbr.rel (0) target = $region29
  $region28: #{jnet_forward.3} parent=0 // pred_region
    _
  $region29: #{jnet_forward.3} parent=0 // pred_fallthru
    _
  // Predicated region
  $region30: #{jnet_forward.3} parent=0 // pred_check
    _
  $region31: #{jnet_forward.3} parent=0 // pred_check_branch
    %323 = sbr.rel (0) target = $region33
  $region32: #{jnet_forward.3} parent=0 // pred_region
    _
  $region33: #{jnet_forward.3} parent=0 // pred_fallthru
    _

// kernel: jnet_forward.2
$region0: #{jnet_forward.2}
  #allocation0 [shape = 'u32[]', space=smem, size = 0x4, offset = 0x4, fixed_abs, tag = 'smem constant byte address 0x4 - core index']
  #allocation1 [shape = 'u32[144,128]{1,0:T(1,128)}', space=vmem, size = 0x12000, scoped, tag = 'internal scratch']
  %s0 = inlined_call_operand.vmem [shape: f32[2,128], index: 0, kind: input, shape index: {}]
  %s1 = inlined_call_operand.vmem [shape: bf16[128,128], index: 1, kind: input, shape index: {}]
  %s2 = inlined_call_operand.vmem [shape: f32[2,2], index: 2, kind: input, shape index: {}]
  %s3 = inlined_call_operand.vmem [shape: f32[2,1], index: 3, kind: input, shape index: {}]
  %s4 = inlined_call_operand.vmem [shape: f32[16,2], index: 4, kind: input, shape index: {}]
  %s5 = inlined_call_operand.vmem [shape: f32[16,1], index: 5, kind: input, shape index: {}]
  %s6 = inlined_call_operand.vmem [shape: f32[16,128], index: 6, kind: output, shape index: {}]
  %s7 = sld [smem:[#allocation0]]
  $region34: #{jnet_forward.2} parent=0
    _
  %s9 = ssub.s32 1, %s7
  %s10 = scalar_select 0, %s9, %s7
  // Predicated region
  $region2: #{jnet_forward.2} parent=0 // pred_check
    _
  $region3: #{jnet_forward.2} parent=0 // pred_check_branch
    %12 = sbr.rel (0) target = $region5
  $region4: #{jnet_forward.2} parent=0 // pred_region
    _
  $region5: #{jnet_forward.2} parent=0 // pred_fallthru
    _
  // Predicated region
  $region6: #{jnet_forward.2} parent=0 // pred_check
    _
  $region7: #{jnet_forward.2} parent=0 // pred_check_branch
    %14 = sbr.rel (0) target = $region9
  $region8: #{jnet_forward.2} parent=0 // pred_region
    _
  $region9: #{jnet_forward.2} parent=0 // pred_fallthru
    _
  // Predicated region
  $region10: #{jnet_forward.2} parent=0 // pred_check
    _
  $region11: #{jnet_forward.2} parent=0 // pred_check_branch
    %16 = sbr.rel (0) target = $region13
  $region12: #{jnet_forward.2} parent=0 // pred_region
    _
  $region13: #{jnet_forward.2} parent=0 // pred_fallthru
    _
  // Predicated region
  $region14: #{jnet_forward.2} parent=0 // pred_check
    _
  $region15: #{jnet_forward.2} parent=0 // pred_check_branch
    %18 = sbr.rel (0) target = $region17
  $region16: #{jnet_forward.2} parent=0 // pred_region
    _
  $region17: #{jnet_forward.2} parent=0 // pred_fallthru
    _
  // Predicated region
  $region18: #{jnet_forward.2} parent=0 // pred_check
    _
  $region19: #{jnet_forward.2} parent=0 // pred_check_branch
    %20 = sbr.rel (0) target = $region21
  $region20: #{jnet_forward.2} parent=0 // pred_region
    _
  $region21: #{jnet_forward.2} parent=0 // pred_fallthru
    _
  // Predicated region
  $region22: #{jnet_forward.2} parent=0 // pred_check
    _
  $region23: #{jnet_forward.2} parent=0 // pred_check_branch
    %22 = sbr.rel (0) target = $region25
  $region24: #{jnet_forward.2} parent=0 // pred_region
    _
  $region25: #{jnet_forward.2} parent=0 // pred_fallthru
    _
  %v23 = vld [vmem:[%s1] sm:$0xf]
  %v24 = vld [vmem:[%s1 + $0x4] sm:$0xf]
  %v25 = vld [vmem:[%s1 + $0x8] sm:$0xf]
  %v26 = vld [vmem:[%s1 + $0xc] sm:$0xf]
  %v27 = vld [vmem:[%s1 + $0x10] sm:$0xf]
  %v28 = vld [vmem:[%s1 + $0x14] sm:$0xf]
  %v29 = vld [vmem:[%s1 + $0x18] sm:$0xf]
  %v30 = vld [vmem:[%s1 + $0x1c] sm:$0xf]
  %v31 = vld [vmem:[%s1 + $0x20] sm:$0xf]
  %v32 = vld [vmem:[%s1 + $0x24] sm:$0xf]
  %v33 = vld [vmem:[%s1 + $0x28] sm:$0xf]
  %v34 = vld [vmem:[%s1 + $0x2c] sm:$0xf]
  %v35 = vld [vmem:[%s1 + $0x30] sm:$0xf]
  %v36 = vld [vmem:[%s1 + $0x34] sm:$0xf]
  %v37 = vld [vmem:[%s1 + $0x38] sm:$0xf]
  %v38 = vld [vmem:[%s1 + $0x3c] sm:$0xf]
  %v39 = vunpack.c.l.bf16 %v23
  %v40 = vunpack.c.l.bf16 %v24
  %v41 = vunpack.c.l.bf16 %v25
  %v42 = vunpack.c.l.bf16 %v26
  %v43 = vunpack.c.l.bf16 %v27
  %v44 = vunpack.c.l.bf16 %v28
  %v45 = vunpack.c.l.bf16 %v29
  %v46 = vunpack.c.l.bf16 %v30
  %v47 = vunpack.c.l.bf16 %v31
  %v48 = vunpack.c.l.bf16 %v32
  %v49 = vunpack.c.l.bf16 %v33
  %v50 = vunpack.c.l.bf16 %v34
  %v51 = vunpack.c.l.bf16 %v35
  %v52 = vunpack.c.l.bf16 %v36
  %v53 = vunpack.c.l.bf16 %v37
  %v54 = vunpack.c.l.bf16 %v38
  %v55 = vld [vmem:[%s0] sm:$0x3]
  %56 = vmatprep.subr.mxu0 0.0
  %57 = vmatpush1.msra.mxu0 %v39
  %58 = vmatprep.subr.mxu0 0.0
  %59 = vmatpush1.msra.mxu0 %v40
  %60 = vmatprep.subr.mxu0 0.0
  %61 = vmatpush1.msra.mxu0 %v41
  %62 = vmatprep.subr.mxu0 0.0
  %63 = vmatpush1.msra.mxu0 %v42
  %64 = vmatprep.subr.mxu0 0.0
  %65 = vmatpush1.msra.mxu0 %v43
  %66 = vmatprep.subr.mxu0 0.0
  %67 = vmatpush1.msra.mxu0 %v44
  %68 = vmatprep.subr.mxu0 0.0
  %69 = vmatpush1.msra.mxu0 %v45
  %70 = vmatprep.subr.mxu0 0.0
  %71 = vmatpush1.msra.mxu0 %v46
  %72 = vmatprep.subr.mxu0 0.0
  %73 = vmatpush1.msra.mxu0 %v47
  %74 = vmatprep.subr.mxu0 0.0
  %75 = vmatpush1.msra.mxu0 %v48
  %76 = vmatprep.subr.mxu0 0.0
  %77 = vmatpush1.msra.mxu0 %v49
  %78 = vmatprep.subr.mxu0 0.0
  %79 = vmatpush1.msra.mxu0 %v50
  %80 = vmatprep.subr.mxu0 0.0
  %81 = vmatpush1.msra.mxu0 %v51
  %82 = vmatprep.subr.mxu0 0.0
  %83 = vmatpush1.msra.mxu0 %v52
  %84 = vmatprep.subr.mxu0 0.0
  %85 = vmatpush1.msra.mxu0 %v53
  %86 = vmatprep.subr.mxu0 0.0
  %87 = vmatpush1.msra.mxu0 %v54
  %88 = vmatprep.subr.mxu0 0.0
  %89 = vmatpush1.msra.mxu0 0.0
  %90 = vmatprep.subr.mxu0 0.0
  %91 = vmatpush1.msra.mxu0 0.0
  %92 = vmatprep.subr.mxu0 0.0
  %93 = vmatpush1.msra.mxu0 0.0
  %94 = vmatprep.subr.mxu0 0.0
  %95 = vmatpush1.msra.mxu0 0.0
  %96 = vmatprep.subr.mxu0 0.0
  %97 = vmatpush1.msra.mxu0 0.0
  %98 = vmatprep.subr.mxu0 0.0
  %99 = vmatpush1.msra.mxu0 0.0
  %100 = vmatprep.subr.mxu0 0.0
  %101 = vmatpush1.msra.mxu0 0.0
  %102 = vmatprep.subr.mxu0 0.0
  %103 = vmatpush1.msra.mxu0 0.0
  %104 = vmatprep.subr.mxu0 0.0
  %105 = vmatpush1.msra.mxu0 0.0
  %106 = vmatprep.subr.mxu0 0.0
  %107 = vmatpush1.msra.mxu0 0.0
  %108 = vmatprep.subr.mxu0 0.0
  %109 = vmatpush1.msra.mxu0 0.0
  %110 = vmatprep.subr.mxu0 0.0
  %111 = vmatpush1.msra.mxu0 0.0
  %112 = vmatprep.subr.mxu0 0.0
  %113 = vmatpush1.msra.mxu0 0.0
  %114 = vmatprep.subr.mxu0 0.0
  %115 = vmatpush1.msra.mxu0 0.0
  %116 = vmatprep.subr.mxu0 0.0
  %117 = vmatpush1.msra.mxu0 0.0
  %118 = vmatprep.subr.mxu0 0.0
  %119 = vmatpush1.msra.mxu0 0.0
  %120 = vmatprep.mubr.f32.mxu0 0.0
  %121 = vmatmul.mubr.f32.gmra.mrb[0].mxu0 %v55
  %v122 = vpop.f32.mrb[0].mxu0
  %v123 = vadd.f32 0.0, %v122
  %v124 = vpop.f32.mrb[0].mxu0
  %125 = vdwg.mxu0
  %v126 = vld [vmem:[%s2] sm:$0x3]
  %v127 = vld [vmem:[%s3] sm:$0x3]
  %129 = vset.pattern.permute.xlu0 0
  %130 = vperm.xlu0 %129, %v127
  %v131 = vpop.permute.xlu0 %130
  %vm133 = vcmask 15360
  %v135 = vsel %vm133, %v126, 0
  %vm137 = vcmask 1041408
  %v139 = vsel %vm137, %v123, 0
  %141 = vmatprep.subr.mxu0 0.0
  %142 = vmatpush1.msra.mxu0 %v139
  %143 = vmatprep.subr.mxu0 0.0
  %144 = vmatpush1.msra.mxu0 0.0
  %145 = vmatprep.subr.mxu0 0.0
  %146 = vmatpush1.msra.mxu0 0.0
  %147 = vmatprep.subr.mxu0 0.0
  %148 = vmatpush1.msra.mxu0 0.0
  %149 = vmatprep.subr.mxu0 0.0
  %150 = vmatpush1.msra.mxu0 0.0
  %151 = vmatprep.subr.mxu0 0.0
  %152 = vmatpush1.msra.mxu0 0.0
  %153 = vmatprep.subr.mxu0 0.0
  %154 = vmatpush1.msra.mxu0 0.0
  %155 = vmatprep.subr.mxu0 0.0
  %156 = vmatpush1.msra.mxu0 0.0
  %157 = vmatprep.subr.mxu0 0.0
  %158 = vmatpush1.msra.mxu0 0.0
  %159 = vmatprep.subr.mxu0 0.0
  %160 = vmatpush1.msra.mxu0 0.0
  %161 = vmatprep.subr.mxu0 0.0
  %162 = vmatpush1.msra.mxu0 0.0
  %163 = vmatprep.subr.mxu0 0.0
  %164 = vmatpush1.msra.mxu0 0.0
  %165 = vmatprep.subr.mxu0 0.0
  %166 = vmatpush1.msra.mxu0 0.0
  %167 = vmatprep.subr.mxu0 0.0
  %168 = vmatpush1.msra.mxu0 0.0
  %169 = vmatprep.subr.mxu0 0.0
  %170 = vmatpush1.msra.mxu0 0.0
  %171 = vmatprep.subr.mxu0 0.0
  %172 = vmatpush1.msra.mxu0 0.0
  %173 = vmatprep.subr.mxu0 0.0
  %174 = vmatpush1.msra.mxu0 0.0
  %175 = vmatprep.subr.mxu0 0.0
  %176 = vmatpush1.msra.mxu0 0.0
  %177 = vmatprep.subr.mxu0 0.0
  %178 = vmatpush1.msra.mxu0 0.0
  %179 = vmatprep.subr.mxu0 0.0
  %180 = vmatpush1.msra.mxu0 0.0
  %181 = vmatprep.subr.mxu0 0.0
  %182 = vmatpush1.msra.mxu0 0.0
  %183 = vmatprep.subr.mxu0 0.0
  %184 = vmatpush1.msra.mxu0 0.0
  %185 = vmatprep.subr.mxu0 0.0
  %186 = vmatpush1.msra.mxu0 0.0
  %187 = vmatprep.subr.mxu0 0.0
  %188 = vmatpush1.msra.mxu0 0.0
  %189 = vmatprep.subr.mxu0 0.0
  %190 = vmatpush1.msra.mxu0 0.0
  %191 = vmatprep.subr.mxu0 0.0
  %192 = vmatpush1.msra.mxu0 0.0
  %193 = vmatprep.subr.mxu0 0.0
  %194 = vmatpush1.msra.mxu0 0.0
  %195 = vmatprep.subr.mxu0 0.0
  %196 = vmatpush1.msra.mxu0 0.0
  %197 = vmatprep.subr.mxu0 0.0
  %198 = vmatpush1.msra.mxu0 0.0
  %199 = vmatprep.subr.mxu0 0.0
  %200 = vmatpush1.msra.mxu0 0.0
  %201 = vmatprep.subr.mxu0 0.0
  %202 = vmatpush1.msra.mxu0 0.0
  %203 = vmatprep.subr.mxu0 0.0
  %204 = vmatpush1.msra.mxu0 0.0
  %205 = vmatprep.mubr.f32.mxu0 0.0
  %206 = vmatmul.mubr.f32.gmra.mrb[0].mxu0 %v135
  %v207 = vpop.f32.mrb[0].mxu0
  %v208 = vadd.f32 %v131, %v207
  %v209 = vpop.f32.mrb[0].mxu0
  %210 = vdwg.mxu0
  %v211 = vmax.f32 %v208, 0.0
  %v212 = vld [vmem:[%s4] sm:$0xff]
  %v213 = vld [vmem:[%s4 + $0x8] sm:$0xff]
  %v214 = vld [vmem:[%s5] sm:$0xff]
  %v215 = vld [vmem:[%s5 + $0x8] sm:$0xff]
  %217 = vset.pattern.permute.xlu0 0
  %218 = vperm.xlu0 %217, %v214
  %v219 = vpop.permute.xlu0 %218
  %222 = vset.pattern.permute.xlu0 0
  %223 = vperm.xlu0 %222, %v215
  %v224 = vpop.permute.xlu0 %223
  %v227 = vsel %vm133, %v212, 0
  %v230 = vsel %vm133, %v213, 0
  %v233 = vsel %vm137, %v211, 0
  %235 = vmatprep.subr.mxu0 0.0
  %236 = vmatpush1.msra.mxu0 %v233
  %237 = vmatprep.subr.mxu0 0.0
  %238 = vmatpush1.msra.mxu0 0.0
  %239 = vmatprep.subr.mxu0 0.0
  %240 = vmatpush1.msra.mxu0 0.0
  %241 = vmatprep.subr.mxu0 0.0
  %242 = vmatpush1.msra.mxu0 0.0
  %243 = vmatprep.subr.mxu0 0.0
  %244 = vmatpush1.msra.mxu0 0.0
  %245 = vmatprep.subr.mxu0 0.0
  %246 = vmatpush1.msra.mxu0 0.0
  %247 = vmatprep.subr.mxu0 0.0
  %248 = vmatpush1.msra.mxu0 0.0
  %249 = vmatprep.subr.mxu0 0.0
  %250 = vmatpush1.msra.mxu0 0.0
  %251 = vmatprep.subr.mxu0 0.0
  %252 = vmatpush1.msra.mxu0 0.0
  %253 = vmatprep.subr.mxu0 0.0
  %254 = vmatpush1.msra.mxu0 0.0
  %255 = vmatprep.subr.mxu0 0.0
  %256 = vmatpush1.msra.mxu0 0.0
  %257 = vmatprep.subr.mxu0 0.0
  %258 = vmatpush1.msra.mxu0 0.0
  %259 = vmatprep.subr.mxu0 0.0
  %260 = vmatpush1.msra.mxu0 0.0
  %261 = vmatprep.subr.mxu0 0.0
  %262 = vmatpush1.msra.mxu0 0.0
  %263 = vmatprep.subr.mxu0 0.0
  %264 = vmatpush1.msra.mxu0 0.0
  %265 = vmatprep.subr.mxu0 0.0
  %266 = vmatpush1.msra.mxu0 0.0
  %267 = vmatprep.subr.mxu0 0.0
  %268 = vmatpush1.msra.mxu0 0.0
  %269 = vmatprep.subr.mxu0 0.0
  %270 = vmatpush1.msra.mxu0 0.0
  %271 = vmatprep.subr.mxu0 0.0
  %272 = vmatpush1.msra.mxu0 0.0
  %273 = vmatprep.subr.mxu0 0.0
  %274 = vmatpush1.msra.mxu0 0.0
  %275 = vmatprep.subr.mxu0 0.0
  %276 = vmatpush1.msra.mxu0 0.0
  %277 = vmatprep.subr.mxu0 0.0
  %278 = vmatpush1.msra.mxu0 0.0
  %279 = vmatprep.subr.mxu0 0.0
  %280 = vmatpush1.msra.mxu0 0.0
  %281 = vmatprep.subr.mxu0 0.0
  %282 = vmatpush1.msra.mxu0 0.0
  %283 = vmatprep.subr.mxu0 0.0
  %284 = vmatpush1.msra.mxu0 0.0
  %285 = vmatprep.subr.mxu0 0.0
  %286 = vmatpush1.msra.mxu0 0.0
  %287 = vmatprep.subr.mxu0 0.0
  %288 = vmatpush1.msra.mxu0 0.0
  %289 = vmatprep.subr.mxu0 0.0
  %290 = vmatpush1.msra.mxu0 0.0
  %291 = vmatprep.subr.mxu0 0.0
  %292 = vmatpush1.msra.mxu0 0.0
  %293 = vmatprep.subr.mxu0 0.0
  %294 = vmatpush1.msra.mxu0 0.0
  %295 = vmatprep.subr.mxu0 0.0
  %296 = vmatpush1.msra.mxu0 0.0
  %297 = vmatprep.subr.mxu0 0.0
  %298 = vmatpush1.msra.mxu0 0.0
  %299 = vmatprep.mubr.f32.mxu0 0.0
  %300 = vmatmul.mubr.f32.gmra.mrb[0].mxu0 %v227
  %v301 = vpop.f32.mrb[0].mxu0
  %v302 = vadd.f32 %v219, %v301
  %v303 = vpop.f32.mrb[0].mxu0
  %304 = vmatprep.mubr.f32.mxu0 0.0
  %305 = vmatmul.mubr.f32.gmra.mrb[0].mxu0 %v230
  %v306 = vpop.f32.mrb[0].mxu0
  %v307 = vadd.f32 %v224, %v306
  %v308 = vpop.f32.mrb[0].mxu0
  %309 = vdwg.mxu0
  %v310 = vmax.f32 %v302, 0.0
  %v311 = vmax.f32 %v307, 0.0
  %312 = vst [vmem:[%s6] sm:$0xff] %v310
  %313 = vst [vmem:[%s6 + $0x8] sm:$0xff] %v311
  // Predicated region
  $region26: #{jnet_forward.2} parent=0 // pred_check
    _
  $region27: #{jnet_forward.2} parent=0 // pred_check_branch
    %315 = sbr.rel (0) target = $region29
  $region28: #{jnet_forward.2} parent=0 // pred_region
    _
  $region29: #{jnet_forward.2} parent=0 // pred_fallthru
    _
  // Predicated region
  $region30: #{jnet_forward.2} parent=0 // pred_check
    _
  $region31: #{jnet_forward.2} parent=0 // pred_check_branch
    %317 = sbr.rel (0) target = $region33
  $region32: #{jnet_forward.2} parent=0 // pred_region
    _
  $region33: #{jnet_forward.2} parent=0 // pred_fallthru
    _

</llo_original>
